<compile_context>
chip_gen: v7x
topology: tpu7x:2x2x1
jax: 0.10.0
libtpu: 0.0.40
codegen_flags: <defaults>
</compile_context>

<pallas_src>
import functools

import jax
import jax.numpy as jnp
from jax.experimental import pallas as pl
from jax.experimental.pallas import tpu as pltpu


def _round_up(x: int, m: int) -> int:
    return (x + m - 1) // m * m


# ----------------------------- Pallas kernel --------------------------------
def _critic_kernel(s_ref, p_ref, r_ref, w_ref, out_ref, *,
                   off_s, off_p, off_r, off_w4, off_w5,
                   off_b1, off_b4, off_b5,
                   state_dim, placing_dim, routing_dim, lane):
    # ---- layer 1: three block-structured matmuls, no concat anywhere ------
    acc = jnp.dot(s_ref[...], w_ref[off_s:off_s + state_dim, :],
                  preferred_element_type=jnp.float32)
    acc = acc + jnp.dot(p_ref[...], w_ref[off_p:off_p + placing_dim, :],
                        preferred_element_type=jnp.float32)
    acc = acc + jnp.dot(r_ref[...], w_ref[off_r:off_r + routing_dim, :],
                        preferred_element_type=jnp.float32)
    h = jnp.maximum(acc + w_ref[off_b1:off_b1 + 1, :], 0.0)      # (B, lane)

    # ---- fc4 (lane-dense (lane x lane) weight block, zero-padded) ---------
    h4 = jnp.dot(h, w_ref[off_w4:off_w4 + lane, :],
                 preferred_element_type=jnp.float32)
    h4 = jnp.maximum(h4 + w_ref[off_b4:off_b4 + 1, :], 0.0)      # (B, lane)

    # ---- fc5 as VPU multiply + XLU lane reduce (avoids an N=1 matmul) -----
    w5 = w_ref[off_w5:off_w5 + 1, :]                             # (1, lane)
    q = jnp.sum(h4 * w5, axis=-1, keepdims=True)                 # (B, 1)
    out_ref[...] = q + w_ref[off_b5:off_b5 + 1, 0:1]


# ------------------------------- wrapper -------------------------------------
def critic_forward(state, placing_action, routing_action, packed):
    """Pallas-backed CriticNet.forward.

    state:          (B, state_dim)         float32
    placing_action: (B, p0, p1)            float32
    routing_action: (B, r0, r1)            float32
    returns:        (B, 1)                 float32
    """
    w_slab, meta = packed
    state_dim, placing_dim, routing_dim, lane, offs = meta

    batch = state.shape[0]
    assert placing_action.shape[0] == batch
    assert routing_action.shape[0] == batch

    # Glue: flatten actions (torch .view); contiguous reshape, effectively free.
    placing = placing_action.reshape(batch, -1)
    routing = routing_action.reshape(batch, -1)
    assert state.shape[1] == state_dim
    assert placing.shape[1] == placing_dim
    assert routing.shape[1] == routing_dim

    kernel = functools.partial(
        _critic_kernel,
        off_s=offs[0], off_p=offs[1], off_r=offs[2],
        off_w4=offs[3], off_w5=offs[4],
        off_b1=offs[5], off_b4=offs[6], off_b5=offs[7],
        state_dim=state_dim, placing_dim=placing_dim,
        routing_dim=routing_dim, lane=lane)

    # Small problem: every operand whole in VMEM, no grid.
    vmem = pl.BlockSpec(memory_space=pltpu.MemorySpace.VMEM)

    out = pl.pallas_call(
        kernel,
        out_shape=jax.ShapeDtypeStruct((batch, 1), jnp.float32),
        in_specs=[vmem] * 4,
        out_specs=vmem,
    )(state, placing, routing, w_slab)
    return out


# --------------------------- deterministic init -------------------------------
def _linear_params(key, fan_in, fan_out):
    """torch.nn.Linear default init: U(-1/sqrt(fan_in), 1/sqrt(fan_in)).
    Weight stored transposed: shape (fan_in, fan_out)."""
    kw, kb = jax.random.split(key)
    bound = 1.0 / jnp.sqrt(jnp.float32(fan_in))
    w = jax.random.uniform(kw, (fan_in, fan_out), jnp.float32, -bound, bound)
    b = jax.random.uniform(kb, (1, fan_out), jnp.float32, -bound, bound)
    return w, b


def make_params(key, state_dim, placing_dims, routing_dims, hidden_dim):
    placing_dim = placing_dims[0] * placing_dims[1]
    routing_dim = routing_dims[0] * routing_dims[1]
    keys = jax.random.split(key, 5)
    fc1 = _linear_params(keys[0], state_dim + placing_dim, hidden_dim)
    fc2 = _linear_params(keys[1], state_dim + routing_dim, hidden_dim)
    fc3 = _linear_params(keys[2], placing_dim + routing_dim, hidden_dim)
    fc4 = _linear_params(keys[3], hidden_dim * 3, hidden_dim)
    fc5 = _linear_params(keys[4], hidden_dim, 1)
    return (fc1, fc2, fc3, fc4, fc5)


# ---------------------- one-time weight restructuring --------------------------
def pack_params(params, state_dim, placing_dims, routing_dims, hidden_dim):
    """Fold the 5 Linear layers (weights AND biases) into one lane-dense slab.

    Layer-1 columns: [0:H]=branch1(fc1), [H:2H]=branch2(fc2), [2H:3H]=branch3(fc3),
    zero-padded to a lane-dense width (multiple of 128).
    Slab rows: [W_state | W_placing | W_routing | W4(padded lane x lane) |
    w5_row | b_layer1 | b_fc4 | b_fc5], each region starting at a sublane(8)-
    aligned offset so in-kernel slices are pure views.
    """
    placing_dim = placing_dims[0] * placing_dims[1]
    routing_dim = routing_dims[0] * routing_dims[1]
    (w1, b1), (w2, b2), (w3, b3), (w4, b4), (w5, b5) = params

    H = hidden_dim
    cat = 3 * H
    lane = _round_up(cat, 128)
    assert H <= lane and cat <= lane

    # Split the branch weights along their input axis.
    w1_s, w1_p = w1[:state_dim], w1[state_dim:]          # fc1: [state, placing]
    w2_s, w2_r = w2[:state_dim], w2[state_dim:]          # fc2: [state, routing]
    w3_p, w3_r = w3[:placing_dim], w3[placing_dim:]      # fc3: [placing, routing]

    W_state = jnp.zeros((state_dim, lane), jnp.float32)
    W_state = W_state.at[:, 0:H].set(w1_s).at[:, H:2 * H].set(w2_s)
    W_placing = jnp.zeros((placing_dim, lane), jnp.float32)
    W_placing = W_placing.at[:, 0:H].set(w1_p).at[:, 2 * H:3 * H].set(w3_p)
    W_routing = jnp.zeros((routing_dim, lane), jnp.float32)
    W_routing = W_routing.at[:, H:2 * H].set(w2_r).at[:, 2 * H:3 * H].set(w3_r)

    W4p = jnp.zeros((lane, lane), jnp.float32).at[0:cat, 0:H].set(w4)
    w5_row = jnp.zeros((lane,), jnp.float32).at[0:H].set(w5[:, 0])

    b_layer1 = (jnp.zeros((lane,), jnp.float32)
                .at[0:H].set(b1[0]).at[H:2 * H].set(b2[0])
                .at[2 * H:3 * H].set(b3[0]))
    b_fc4 = jnp.zeros((lane,), jnp.float32).at[0:H].set(b4[0])
    b_fc5 = jnp.zeros((lane,), jnp.float32).at[0].set(b5[0, 0])

    # Sublane(8)-aligned region offsets inside the slab.
    off_s = 0
    off_p = _round_up(state_dim, 8)
    off_r = off_p + _round_up(placing_dim, 8)
    off_w4 = off_r + _round_up(routing_dim, 8)
    off_w5 = off_w4 + lane                     # lane is a multiple of 128 -> aligned
    off_b1 = off_w5 + 8
    off_b4 = off_b1 + 8
    off_b5 = off_b4 + 8
    total = off_b5 + 8

    w_slab = jnp.zeros((total, lane), jnp.float32)
    w_slab = w_slab.at[off_s:off_s + state_dim].set(W_state)
    w_slab = w_slab.at[off_p:off_p + placing_dim].set(W_placing)
    w_slab = w_slab.at[off_r:off_r + routing_dim].set(W_routing)
    w_slab = w_slab.at[off_w4:off_w4 + lane].set(W4p)
    w_slab = w_slab.at[off_w5].set(w5_row)
    w_slab = w_slab.at[off_b1].set(b_layer1)
    w_slab = w_slab.at[off_b4].set(b_fc4)
    w_slab = w_slab.at[off_b5].set(b_fc5)

    meta = (state_dim, placing_dim, routing_dim, lane,
            (off_s, off_p, off_r, off_w4, off_w5, off_b1, off_b4, off_b5))
    return (w_slab, meta)


# ------------------------------ reference -------------------------------------
def critic_forward_ref(state, placing_action, routing_action, params):
    batch = state.shape[0]
    placing = placing_action.reshape(batch, -1)
    routing = routing_action.reshape(batch, -1)
    x1 = jnp.concatenate([state, placing], axis=1)
    x2 = jnp.concatenate([state, routing], axis=1)
    x3 = jnp.concatenate([placing, routing], axis=1)
    (w1, b1), (w2, b2), (w3, b3), (w4, b4), (w5, b5) = params
    h1 = jax.nn.relu(x1 @ w1 + b1)
    h2 = jax.nn.relu(x2 @ w2 + b2)
    h3 = jax.nn.relu(x3 @ w3 + b3)
    h = jnp.concatenate([h1, h2, h3], axis=1)
    h4 = jax.nn.relu(h @ w4 + b4)
    return h4 @ w5 + b5


# -------------------------------- main ----------------------------------------
if __name__ == "__main__":
    # Small, forward-consistent shapes.
    batch = 8
    state_dim = 24
    placing_dims = (4, 4)   # flattened -> 16
    routing_dims = (2, 8)   # flattened -> 16
    hidden_dim = 32

    key = jax.random.PRNGKey(0)
    kp, ks, ka1, ka2 = jax.random.split(key, 4)

    params = make_params(kp, state_dim, placing_dims, routing_dims, hidden_dim)
    packed = pack_params(params, state_dim, placing_dims, routing_dims, hidden_dim)

    state = jax.random.normal(ks, (batch, state_dim), jnp.float32)
    placing_action = jax.random.normal(ka1, (batch,) + placing_dims, jnp.float32)
    routing_action = jax.random.normal(ka2, (batch,) + routing_dims, jnp.float32)

    q = critic_forward(state, placing_action, routing_action, packed)
    q = jax.block_until_ready(q)

    q_ref = critic_forward_ref(state, placing_action, routing_action, params)
    assert q.shape == (batch, 1), q.shape
    assert jnp.allclose(q, q_ref, atol=1e-4, rtol=1e-4), (q, q_ref)

    print("KERNEL_OK")
</pallas_src>

<mosaic_0001>
module attributes {stable_mosaic.version = 11 : i64} {
  func.func @_critic_kernel(%arg0: memref<8x24xf32, #tpu.memory_space<vmem>>, %arg1: memref<8x16xf32, #tpu.memory_space<vmem>>, %arg2: memref<8x16xf32, #tpu.memory_space<vmem>>, %arg3: memref<216x128xf32, #tpu.memory_space<vmem>>, %arg4: memref<8x1xf32, #tpu.memory_space<vmem>>) attributes {dimension_semantics = [], scalar_prefetch = 0 : i64, scratch_operands = 0 : i64, tpu.core_type = #tpu.core_type<tc>} {
    %c0 = arith.constant 0 : index
    %c0_0 = arith.constant 0 : index
    %0 = vector.load %arg0[%c0, %c0_0] : memref<8x24xf32, #tpu.memory_space<vmem>>, vector<8x24xf32>
    %c0_1 = arith.constant 0 : index
    %c0_2 = arith.constant 0 : index
    %1 = vector.load %arg3[%c0_1, %c0_2] : memref<216x128xf32, #tpu.memory_space<vmem>>, vector<24x128xf32>
    %cst = arith.constant dense<0.000000e+00> : vector<8x128xf32>
    %2 = tpu.matmul %0, %1, %cst {dimension_numbers = #tpu.dot_dimension_numbers<[1], [0], [0], [1], [0, 0, 1, 1], [], []>} : vector<8x24xf32>, vector<24x128xf32>, vector<8x128xf32> -> vector<8x128xf32>
    %c0_3 = arith.constant 0 : index
    %c0_4 = arith.constant 0 : index
    %3 = vector.load %arg1[%c0_3, %c0_4] : memref<8x16xf32, #tpu.memory_space<vmem>>, vector<8x16xf32>
    %c24 = arith.constant 24 : index
    %c0_5 = arith.constant 0 : index
    %4 = vector.load %arg3[%c24, %c0_5] : memref<216x128xf32, #tpu.memory_space<vmem>>, vector<16x128xf32>
    %cst_6 = arith.constant dense<0.000000e+00> : vector<8x128xf32>
    %5 = tpu.matmul %3, %4, %cst_6 {dimension_numbers = #tpu.dot_dimension_numbers<[1], [0], [0], [1], [0, 0, 1, 1], [], []>} : vector<8x16xf32>, vector<16x128xf32>, vector<8x128xf32> -> vector<8x128xf32>
    %6 = arith.addf %2, %5 : vector<8x128xf32>
    %c0_7 = arith.constant 0 : index
    %c0_8 = arith.constant 0 : index
    %7 = vector.load %arg2[%c0_7, %c0_8] : memref<8x16xf32, #tpu.memory_space<vmem>>, vector<8x16xf32>
    %c40 = arith.constant 40 : index
    %c0_9 = arith.constant 0 : index
    %8 = vector.load %arg3[%c40, %c0_9] : memref<216x128xf32, #tpu.memory_space<vmem>>, vector<16x128xf32>
    %cst_10 = arith.constant dense<0.000000e+00> : vector<8x128xf32>
    %9 = tpu.matmul %7, %8, %cst_10 {dimension_numbers = #tpu.dot_dimension_numbers<[1], [0], [0], [1], [0, 0, 1, 1], [], []>} : vector<8x16xf32>, vector<16x128xf32>, vector<8x128xf32> -> vector<8x128xf32>
    %10 = arith.addf %6, %9 : vector<8x128xf32>
    %c192 = arith.constant 192 : index
    %c0_11 = arith.constant 0 : index
    %11 = vector.load %arg3[%c192, %c0_11] : memref<216x128xf32, #tpu.memory_space<vmem>>, vector<1x128xf32>
    %12 = vector.broadcast %11 : vector<1x128xf32> to vector<8x128xf32>
    %13 = arith.addf %10, %12 : vector<8x128xf32>
    %cst_12 = arith.constant 0.000000e+00 : f32
    %14 = vector.broadcast %cst_12 : f32 to vector<8x128xf32>
    %15 = arith.maximumf %13, %14 : vector<8x128xf32>
    %c56 = arith.constant 56 : index
    %c0_13 = arith.constant 0 : index
    %16 = vector.load %arg3[%c56, %c0_13] : memref<216x128xf32, #tpu.memory_space<vmem>>, vector<128x128xf32>
    %cst_14 = arith.constant dense<0.000000e+00> : vector<8x128xf32>
    %17 = tpu.matmul %15, %16, %cst_14 {dimension_numbers = #tpu.dot_dimension_numbers<[1], [0], [0], [1], [0, 0, 1, 1], [], []>} : vector<8x128xf32>, vector<128x128xf32>, vector<8x128xf32> -> vector<8x128xf32>
    %c200 = arith.constant 200 : index
    %c0_15 = arith.constant 0 : index
    %18 = vector.load %arg3[%c200, %c0_15] : memref<216x128xf32, #tpu.memory_space<vmem>>, vector<1x128xf32>
    %19 = vector.broadcast %18 : vector<1x128xf32> to vector<8x128xf32>
    %20 = arith.addf %17, %19 : vector<8x128xf32>
    %cst_16 = arith.constant 0.000000e+00 : f32
    %21 = vector.broadcast %cst_16 : f32 to vector<8x128xf32>
    %22 = arith.maximumf %20, %21 : vector<8x128xf32>
    %c184 = arith.constant 184 : index
    %c0_17 = arith.constant 0 : index
    %23 = vector.load %arg3[%c184, %c0_17] : memref<216x128xf32, #tpu.memory_space<vmem>>, vector<1x128xf32>
    %24 = vector.broadcast %23 : vector<1x128xf32> to vector<8x128xf32>
    %25 = arith.mulf %22, %24 : vector<8x128xf32>
    %cst_18 = arith.constant dense<0.000000e+00> : vector<8xf32>
    %26 = vector.multi_reduction <add>, %25, %cst_18 [1] : vector<8x128xf32> to vector<8xf32>
    %27 = vector.shape_cast %26 : vector<8xf32> to vector<8x1xf32>
    %c208 = arith.constant 208 : index
    %c0_19 = arith.constant 0 : index
    %28 = vector.load %arg3[%c208, %c0_19] : memref<216x128xf32, #tpu.memory_space<vmem>>, vector<1x1xf32>
    %29 = vector.broadcast %28 : vector<1x1xf32> to vector<8x1xf32>
    %30 = arith.addf %27, %29 : vector<8x1xf32>
    %c0_20 = arith.constant 0 : index
    %c0_21 = arith.constant 0 : index
    %31 = vector.load %arg4[%c0_20, %c0_21] : memref<8x1xf32, #tpu.memory_space<vmem>>, vector<8x1xf32>
    tpu.vector_store %arg4[%c0_20, %c0_21], %30 {strides = array<i32>} : memref<8x1xf32, #tpu.memory_space<vmem>>, vector<8x1xf32>,
    return
  }
}

</mosaic_0001>

<llo_original>
// kernel: tpu_custom_call.1
$region0: #{tpu_custom_call.1}
  #allocation0 [shape = 'u32[]', space=smem, size = 0x4, offset = 0x4, fixed_abs, tag = 'smem constant byte address 0x4 - core index']
  #allocation1 [shape = 'u32[144,128]{1,0:T(1,128)}', space=vmem, size = 0x12000, scoped, tag = 'internal scratch']
  %s0 = inlined_call_operand.hbm [shape: f32[8,24], index: 0, kind: input, shape index: {}]
  %s1 = inlined_call_operand.hbm [shape: f32[8,16], index: 1, kind: input, shape index: {}]
  %s2 = inlined_call_operand.hbm [shape: f32[8,16], index: 2, kind: input, shape index: {}]
  %s3 = inlined_call_operand.hbm [shape: f32[216,128], index: 3, kind: input, shape index: {}]
  %s4 = inlined_call_operand.vmem [shape: f32[8,1], index: 4, kind: output, shape index: {}]
  %s5 = sld [smem:[#allocation0]]
  $region42: #{tpu_custom_call.1} parent=0
    _
  %s7 = ssub.s32 1, %s5
  %s8 = scalar_select 0, %s7, %s5
  $region1: #{tpu_custom_call.1} parent=0
    #allocation2 [shape = 'u8[4096]{0}', space=vmem, size = 0x1000, scoped, tag = 'input window, operand 0, single buffered']
    #allocation3 [shape = 's32[1]{0}', space=sflag, size = 0x4, scoped, tag = 'scoped memory for tpu_custom_call.1']
    #allocation4 [shape = 'u8[4096]{0}', space=vmem, size = 0x1000, scoped, tag = 'input window, operand 1, single buffered']
    #allocation5 [shape = 's32[1]{0}', space=sflag, size = 0x4, scoped, tag = 'scoped memory for tpu_custom_call.1']
    #allocation6 [shape = 'u8[4096]{0}', space=vmem, size = 0x1000, scoped, tag = 'input window, operand 2, single buffered']
    #allocation7 [shape = 'u8[110592]{0}', space=vmem, size = 0x1b000, scoped, tag = 'input window, operand 3, single buffered']
    #allocation8 [shape = 's32[1]{0}', space=sflag, size = 0x4, scoped, tag = 'scoped memory for tpu_custom_call.1']
    %9 = vsyncpa [#allocation3], 0
    %10 = vsyncpa [#allocation5], 0
    %11 = vsyncpa [#allocation8], 0
    // Predicated region
    $region2: #{tpu_custom_call.1} parent=1 // pred_check
      _
    $region3: #{tpu_custom_call.1} parent=1 // pred_check_branch
      %13 = sbr.rel (0) target = $region5
    $region4: #{tpu_custom_call.1} parent=1 // pred_region
      %s15 = ssub.s32 128, 128
      %16 = vsyncadd [#allocation3], %s15
      %s18 = sshll.u32 [#allocation2], 4
      %s19 = int_to_ptr.vmem [resolvable:$true] %s18
      %21 = dma.hbm_to_vmem [thread:$0]  %s0, 128, %s19, [#allocation3]
    $region5: #{tpu_custom_call.1} parent=1 // pred_fallthru
      _
    // Predicated region
    $region6: #{tpu_custom_call.1} parent=1 // pred_check
      _
    $region7: #{tpu_custom_call.1} parent=1 // pred_check_branch
      %23 = sbr.rel (0) target = $region9
    $region8: #{tpu_custom_call.1} parent=1 // pred_region
      %s25 = ssub.s32 128, 128
      %26 = vsyncadd [#allocation5], %s25
      %s28 = sshll.u32 [#allocation4], 4
      %s29 = int_to_ptr.vmem [resolvable:$true] %s28
      %31 = dma.hbm_to_vmem [thread:$0]  %s1, 128, %s29, [#allocation5]
    $region9: #{tpu_custom_call.1} parent=1 // pred_fallthru
      _
    // Predicated region
    $region10: #{tpu_custom_call.1} parent=1 // pred_check
      _
    $region11: #{tpu_custom_call.1} parent=1 // pred_check_branch
      %33 = sbr.rel (0) target = $region13
    $region12: #{tpu_custom_call.1} parent=1 // pred_region
      %s35 = ssub.s32 128, 128
      %36 = vsyncadd [#allocation5], %s35
      %s38 = sshll.u32 [#allocation6], 4
      %s39 = int_to_ptr.vmem [resolvable:$true] %s38
      %41 = dma.hbm_to_vmem [thread:$0]  %s2, 128, %s39, [#allocation5]
    $region13: #{tpu_custom_call.1} parent=1 // pred_fallthru
      _
    // Predicated region
    $region14: #{tpu_custom_call.1} parent=1 // pred_check
      _
    $region15: #{tpu_custom_call.1} parent=1 // pred_check_branch
      %43 = sbr.rel (0) target = $region17
    $region16: #{tpu_custom_call.1} parent=1 // pred_region
      %s45 = ssub.s32 3456, 3456
      %46 = vsyncadd [#allocation8], %s45
      %s47 = sshll.u32 [#allocation7], 4
      %s48 = int_to_ptr.vmem [resolvable:$true] %s47
      %53 = dma.hbm_to_vmem [thread:$0]  %s3, 3456, %s48, [#allocation8], 128, 128, 8
    $region17: #{tpu_custom_call.1} parent=1 // pred_fallthru
      _
    // Predicated region
    $region18: #{tpu_custom_call.1} parent=1 // pred_check
      _
    $region19: #{tpu_custom_call.1} parent=1 // pred_check_branch
      %55 = sbr.rel (0) target = $region21
    $region20: #{tpu_custom_call.1} parent=1 // pred_region
      %56 = dma.done [#allocation3], 128
    $region21: #{tpu_custom_call.1} parent=1 // pred_fallthru
      _
    // Predicated region
    $region22: #{tpu_custom_call.1} parent=1 // pred_check
      _
    $region23: #{tpu_custom_call.1} parent=1 // pred_check_branch
      %58 = sbr.rel (0) target = $region25
    $region24: #{tpu_custom_call.1} parent=1 // pred_region
      %59 = dma.done [#allocation5], 128
    $region25: #{tpu_custom_call.1} parent=1 // pred_fallthru
      _
    // Predicated region
    $region26: #{tpu_custom_call.1} parent=1 // pred_check
      _
    $region27: #{tpu_custom_call.1} parent=1 // pred_check_branch
      %61 = sbr.rel (0) target = $region29
    $region28: #{tpu_custom_call.1} parent=1 // pred_region
      %62 = dma.done [#allocation5], 128
    $region29: #{tpu_custom_call.1} parent=1 // pred_fallthru
      _
    // Predicated region
    $region30: #{tpu_custom_call.1} parent=1 // pred_check
      _
    $region31: #{tpu_custom_call.1} parent=1 // pred_check_branch
      %64 = sbr.rel (0) target = $region33
    $region32: #{tpu_custom_call.1} parent=1 // pred_region
      %65 = dma.done [#allocation8], 3456
    $region33: #{tpu_custom_call.1} parent=1 // pred_fallthru
      _
    %v66 = vld [vmem:[#allocation2] sm:$0xff]
    %v67 = vld [vmem:[#allocation7] sm:$0xff]
    %v68 = vld [vmem:[#allocation7 + $0x8] sm:$0xff]
    %v69 = vld [vmem:[#allocation7 + $0x10] sm:$0xff]
    %v70 = vld [vmem:[#allocation4] sm:$0xff]
    %v71 = vld [vmem:[#allocation7 + $0x18] sm:$0xff]
    %v72 = vld [vmem:[#allocation7 + $0x20] sm:$0xff]
    %vm73 = vcmask 130048
    %v75 = vsel %vm73, %v70, 0
    %77 = vmatprep.subr.mxu0 0.0
    %78 = vmatpush1.msra.mxu0 %v71
    %79 = vmatprep.subr.mxu0 0.0
    %80 = vmatpush1.msra.mxu0 %v72
    %81 = vmatprep.subr.mxu0 0.0
    %82 = vmatpush1.msra.mxu0 0.0
    %83 = vmatprep.subr.mxu0 0.0
    %84 = vmatpush1.msra.mxu0 0.0
    %85 = vmatprep.subr.mxu0 0.0
    %86 = vmatpush1.msra.mxu0 0.0
    %87 = vmatprep.subr.mxu0 0.0
    %88 = vmatpush1.msra.mxu0 0.0
    %89 = vmatprep.subr.mxu0 0.0
    %90 = vmatpush1.msra.mxu0 0.0
    %91 = vmatprep.subr.mxu0 0.0
    %92 = vmatpush1.msra.mxu0 0.0
    %93 = vmatprep.subr.mxu0 0.0
    %94 = vmatpush1.msra.mxu0 0.0
    %95 = vmatprep.subr.mxu0 0.0
    %96 = vmatpush1.msra.mxu0 0.0
    %97 = vmatprep.subr.mxu0 0.0
    %98 = vmatpush1.msra.mxu0 0.0
    %99 = vmatprep.subr.mxu0 0.0
    %100 = vmatpush1.msra.mxu0 0.0
    %101 = vmatprep.subr.mxu0 0.0
    %102 = vmatpush1.msra.mxu0 0.0
    %103 = vmatprep.subr.mxu0 0.0
    %104 = vmatpush1.msra.mxu0 0.0
    %105 = vmatprep.subr.mxu0 0.0
    %106 = vmatpush1.msra.mxu0 0.0
    %107 = vmatprep.subr.mxu0 0.0
    %108 = vmatpush1.msra.mxu0 0.0
    %109 = vmatprep.subr.mxu0 0.0
    %110 = vmatpush1.msra.mxu0 0.0
    %111 = vmatprep.subr.mxu0 0.0
    %112 = vmatpush1.msra.mxu0 0.0
    %113 = vmatprep.subr.mxu0 0.0
    %114 = vmatpush1.msra.mxu0 0.0
    %115 = vmatprep.subr.mxu0 0.0
    %116 = vmatpush1.msra.mxu0 0.0
    %117 = vmatprep.subr.mxu0 0.0
    %118 = vmatpush1.msra.mxu0 0.0
    %119 = vmatprep.subr.mxu0 0.0
    %120 = vmatpush1.msra.mxu0 0.0
    %121 = vmatprep.subr.mxu0 0.0
    %122 = vmatpush1.msra.mxu0 0.0
    %123 = vmatprep.subr.mxu0 0.0
    %124 = vmatpush1.msra.mxu0 0.0
    %125 = vmatprep.subr.mxu0 0.0
    %126 = vmatpush1.msra.mxu0 0.0
    %127 = vmatprep.subr.mxu0 0.0
    %128 = vmatpush1.msra.mxu0 0.0
    %129 = vmatprep.subr.mxu0 0.0
    %130 = vmatpush1.msra.mxu0 0.0
    %131 = vmatprep.subr.mxu0 0.0
    %132 = vmatpush1.msra.mxu0 0.0
    %133 = vmatprep.subr.mxu0 0.0
    %134 = vmatpush1.msra.mxu0 0.0
    %135 = vmatprep.subr.mxu0 0.0
    %136 = vmatpush1.msra.mxu0 0.0
    %137 = vmatprep.subr.mxu0 0.0
    %138 = vmatpush1.msra.mxu0 0.0
    %139 = vmatprep.subr.mxu0 0.0
    %140 = vmatpush1.msra.mxu0 0.0
    %141 = vmatprep.mubr.f32.mxu0 0.0
    %142 = vmatmul.mubr.f32.gmra.mrb[0].mxu0 %v75
    %v143 = vpop.f32.mrb[0].mxu0
    %v144 = vadd.f32 0.0, %v143
    %v145 = vpop.f32.mrb[0].mxu0
    %146 = vdwg.mxu0
    %vm147 = vcmask 195584
    %v149 = vsel %vm147, %v66, 0
    %151 = vmatprep.subr.mxu0 0.0
    %152 = vmatpush1.msra.mxu0 %v67
    %153 = vmatprep.subr.mxu0 0.0
    %154 = vmatpush1.msra.mxu0 %v68
    %155 = vmatprep.subr.mxu0 0.0
    %156 = vmatpush1.msra.mxu0 %v69
    %157 = vmatprep.subr.mxu0 0.0
    %158 = vmatpush1.msra.mxu0 0.0
    %159 = vmatprep.subr.mxu0 0.0
    %160 = vmatpush1.msra.mxu0 0.0
    %161 = vmatprep.subr.mxu0 0.0
    %162 = vmatpush1.msra.mxu0 0.0
    %163 = vmatprep.subr.mxu0 0.0
    %164 = vmatpush1.msra.mxu0 0.0
    %165 = vmatprep.subr.mxu0 0.0
    %166 = vmatpush1.msra.mxu0 0.0
    %167 = vmatprep.subr.mxu0 0.0
    %168 = vmatpush1.msra.mxu0 0.0
    %169 = vmatprep.subr.mxu0 0.0
    %170 = vmatpush1.msra.mxu0 0.0
    %171 = vmatprep.subr.mxu0 0.0
    %172 = vmatpush1.msra.mxu0 0.0
    %173 = vmatprep.subr.mxu0 0.0
    %174 = vmatpush1.msra.mxu0 0.0
    %175 = vmatprep.subr.mxu0 0.0
    %176 = vmatpush1.msra.mxu0 0.0
    %177 = vmatprep.subr.mxu0 0.0
    %178 = vmatpush1.msra.mxu0 0.0
    %179 = vmatprep.subr.mxu0 0.0
    %180 = vmatpush1.msra.mxu0 0.0
    %181 = vmatprep.subr.mxu0 0.0
    %182 = vmatpush1.msra.mxu0 0.0
    %183 = vmatprep.subr.mxu0 0.0
    %184 = vmatpush1.msra.mxu0 0.0
    %185 = vmatprep.subr.mxu0 0.0
    %186 = vmatpush1.msra.mxu0 0.0
    %187 = vmatprep.subr.mxu0 0.0
    %188 = vmatpush1.msra.mxu0 0.0
    %189 = vmatprep.subr.mxu0 0.0
    %190 = vmatpush1.msra.mxu0 0.0
    %191 = vmatprep.subr.mxu0 0.0
    %192 = vmatpush1.msra.mxu0 0.0
    %193 = vmatprep.subr.mxu0 0.0
    %194 = vmatpush1.msra.mxu0 0.0
    %195 = vmatprep.subr.mxu0 0.0
    %196 = vmatpush1.msra.mxu0 0.0
    %197 = vmatprep.subr.mxu0 0.0
    %198 = vmatpush1.msra.mxu0 0.0
    %199 = vmatprep.subr.mxu0 0.0
    %200 = vmatpush1.msra.mxu0 0.0
    %201 = vmatprep.subr.mxu0 0.0
    %202 = vmatpush1.msra.mxu0 0.0
    %203 = vmatprep.subr.mxu0 0.0
    %204 = vmatpush1.msra.mxu0 0.0
    %205 = vmatprep.subr.mxu0 0.0
    %206 = vmatpush1.msra.mxu0 0.0
    %207 = vmatprep.subr.mxu0 0.0
    %208 = vmatpush1.msra.mxu0 0.0
    %209 = vmatprep.subr.mxu0 0.0
    %210 = vmatpush1.msra.mxu0 0.0
    %211 = vmatprep.subr.mxu0 0.0
    %212 = vmatpush1.msra.mxu0 0.0
    %213 = vmatprep.subr.mxu0 0.0
    %214 = vmatpush1.msra.mxu0 0.0
    %215 = vmatprep.mubr.f32.mxu0 0.0
    %216 = vmatmul.mubr.f32.gmra.mrb[0].mxu0 %v149
    %v217 = vpop.f32.mrb[0].mxu0
    %v218 = vadd.f32 %v144, %v217
    %v219 = vpop.f32.mrb[0].mxu0
    %220 = vdwg.mxu0
    %v221 = vld [vmem:[#allocation6] sm:$0xff]
    %v222 = vld [vmem:[#allocation7 + $0x28] sm:$0xff]
    %v223 = vld [vmem:[#allocation7 + $0x30] sm:$0xff]
    %v225 = vsel %vm73, %v221, 0
    %227 = vmatprep.subr.mxu0 0.0
    %228 = vmatpush1.msra.mxu0 %v222
    %229 = vmatprep.subr.mxu0 0.0
    %230 = vmatpush1.msra.mxu0 %v223
    %231 = vmatprep.subr.mxu0 0.0
    %232 = vmatpush1.msra.mxu0 0.0
    %233 = vmatprep.subr.mxu0 0.0
    %234 = vmatpush1.msra.mxu0 0.0
    %235 = vmatprep.subr.mxu0 0.0
    %236 = vmatpush1.msra.mxu0 0.0
    %237 = vmatprep.subr.mxu0 0.0
    %238 = vmatpush1.msra.mxu0 0.0
    %239 = vmatprep.subr.mxu0 0.0
    %240 = vmatpush1.msra.mxu0 0.0
    %241 = vmatprep.subr.mxu0 0.0
    %242 = vmatpush1.msra.mxu0 0.0
    %243 = vmatprep.subr.mxu0 0.0
    %244 = vmatpush1.msra.mxu0 0.0
    %245 = vmatprep.subr.mxu0 0.0
    %246 = vmatpush1.msra.mxu0 0.0
    %247 = vmatprep.subr.mxu0 0.0
    %248 = vmatpush1.msra.mxu0 0.0
    %249 = vmatprep.subr.mxu0 0.0
    %250 = vmatpush1.msra.mxu0 0.0
    %251 = vmatprep.subr.mxu0 0.0
    %252 = vmatpush1.msra.mxu0 0.0
    %253 = vmatprep.subr.mxu0 0.0
    %254 = vmatpush1.msra.mxu0 0.0
    %255 = vmatprep.subr.mxu0 0.0
    %256 = vmatpush1.msra.mxu0 0.0
    %257 = vmatprep.subr.mxu0 0.0
    %258 = vmatpush1.msra.mxu0 0.0
    %259 = vmatprep.subr.mxu0 0.0
    %260 = vmatpush1.msra.mxu0 0.0
    %261 = vmatprep.subr.mxu0 0.0
    %262 = vmatpush1.msra.mxu0 0.0
    %263 = vmatprep.subr.mxu0 0.0
    %264 = vmatpush1.msra.mxu0 0.0
    %265 = vmatprep.subr.mxu0 0.0
    %266 = vmatpush1.msra.mxu0 0.0
    %267 = vmatprep.subr.mxu0 0.0
    %268 = vmatpush1.msra.mxu0 0.0
    %269 = vmatprep.subr.mxu0 0.0
    %270 = vmatpush1.msra.mxu0 0.0
    %271 = vmatprep.subr.mxu0 0.0
    %272 = vmatpush1.msra.mxu0 0.0
    %273 = vmatprep.subr.mxu0 0.0
    %274 = vmatpush1.msra.mxu0 0.0
    %275 = vmatprep.subr.mxu0 0.0
    %276 = vmatpush1.msra.mxu0 0.0
    %277 = vmatprep.subr.mxu0 0.0
    %278 = vmatpush1.msra.mxu0 0.0
    %279 = vmatprep.subr.mxu0 0.0
    %280 = vmatpush1.msra.mxu0 0.0
    %281 = vmatprep.subr.mxu0 0.0
    %282 = vmatpush1.msra.mxu0 0.0
    %283 = vmatprep.subr.mxu0 0.0
    %284 = vmatpush1.msra.mxu0 0.0
    %285 = vmatprep.subr.mxu0 0.0
    %286 = vmatpush1.msra.mxu0 0.0
    %287 = vmatprep.subr.mxu0 0.0
    %288 = vmatpush1.msra.mxu0 0.0
    %289 = vmatprep.subr.mxu0 0.0
    %290 = vmatpush1.msra.mxu0 0.0
    %291 = vmatprep.mubr.f32.mxu0 0.0
    %292 = vmatmul.mubr.f32.gmra.mrb[0].mxu0 %v225
    %v293 = vpop.f32.mrb[0].mxu0
    %v294 = vadd.f32 0.0, %v293
    %v295 = vpop.f32.mrb[0].mxu0
    %296 = vdwg.mxu0
    %v297 = vadd.f32 %v218, %v294
    %v298 = vld [vmem:[#allocation7 + $0xc0] sm:$0x1]
    %v299 = vlaneseq
    %v300 = vshrl.u32 %v299, 7
    %v301 = vsub.s32 0, %v300
    %v302 = vrot.slane %v298, %v301
    %v303 = vadd.f32 %v297, %v302
    %v304 = vmax.f32 %v303, 0.0
    %v305 = vld [vmem:[#allocation7 + $0x38] sm:$0xff]
    %v306 = vld [vmem:[#allocation7 + $0x40] sm:$0xff]
    %v307 = vld [vmem:[#allocation7 + $0x48] sm:$0xff]
    %v308 = vld [vmem:[#allocation7 + $0x50] sm:$0xff]
    %v309 = vld [vmem:[#allocation7 + $0x58] sm:$0xff]
    %v310 = vld [vmem:[#allocation7 + $0x60] sm:$0xff]
    %v311 = vld [vmem:[#allocation7 + $0x68] sm:$0xff]
    %v312 = vld [vmem:[#allocation7 + $0x70] sm:$0xff]
    %v313 = vld [vmem:[#allocation7 + $0x78] sm:$0xff]
    %v314 = vld [vmem:[#allocation7 + $0x80] sm:$0xff]
    %v315 = vld [vmem:[#allocation7 + $0x88] sm:$0xff]
    %v316 = vld [vmem:[#allocation7 + $0x90] sm:$0xff]
    %v317 = vld [vmem:[#allocation7 + $0x98] sm:$0xff]
    %v318 = vld [vmem:[#allocation7 + $0xa0] sm:$0xff]
    %v319 = vld [vmem:[#allocation7 + $0xa8] sm:$0xff]
    %v320 = vld [vmem:[#allocation7 + $0xb0] sm:$0xff]
    %v321 = vld [vmem:[#allocation7 + $0xc8] sm:$0x1]
    %v322 = vlaneseq
    %v323 = vshrl.u32 %v322, 7
    %v324 = vsub.s32 0, %v323
    %v325 = vrot.slane %v321, %v324
    %326 = vmatprep.subr.mxu0 0.0
    %327 = vmatpush1.msra.mxu0 %v305
    %328 = vmatprep.subr.mxu0 0.0
    %329 = vmatpush1.msra.mxu0 %v306
    %330 = vmatprep.subr.mxu0 0.0
    %331 = vmatpush1.msra.mxu0 %v307
    %332 = vmatprep.subr.mxu0 0.0
    %333 = vmatpush1.msra.mxu0 %v308
    %334 = vmatprep.subr.mxu0 0.0
    %335 = vmatpush1.msra.mxu0 %v309
    %336 = vmatprep.subr.mxu0 0.0
    %337 = vmatpush1.msra.mxu0 %v310
    %338 = vmatprep.subr.mxu0 0.0
    %339 = vmatpush1.msra.mxu0 %v311
    %340 = vmatprep.subr.mxu0 0.0
    %341 = vmatpush1.msra.mxu0 %v312
    %342 = vmatprep.subr.mxu0 0.0
    %343 = vmatpush1.msra.mxu0 %v313
    %344 = vmatprep.subr.mxu0 0.0
    %345 = vmatpush1.msra.mxu0 %v314
    %346 = vmatprep.subr.mxu0 0.0
    %347 = vmatpush1.msra.mxu0 %v315
    %348 = vmatprep.subr.mxu0 0.0
    %349 = vmatpush1.msra.mxu0 %v316
    %350 = vmatprep.subr.mxu0 0.0
    %351 = vmatpush1.msra.mxu0 %v317
    %352 = vmatprep.subr.mxu0 0.0
    %353 = vmatpush1.msra.mxu0 %v318
    %354 = vmatprep.subr.mxu0 0.0
    %355 = vmatpush1.msra.mxu0 %v319
    %356 = vmatprep.subr.mxu0 0.0
    %357 = vmatpush1.msra.mxu0 %v320
    %358 = vmatprep.subr.mxu0 0.0
    %359 = vmatpush1.msra.mxu0 0.0
    %360 = vmatprep.subr.mxu0 0.0
    %361 = vmatpush1.msra.mxu0 0.0
    %362 = vmatprep.subr.mxu0 0.0
    %363 = vmatpush1.msra.mxu0 0.0
    %364 = vmatprep.subr.mxu0 0.0
    %365 = vmatpush1.msra.mxu0 0.0
    %366 = vmatprep.subr.mxu0 0.0
    %367 = vmatpush1.msra.mxu0 0.0
    %368 = vmatprep.subr.mxu0 0.0
    %369 = vmatpush1.msra.mxu0 0.0
    %370 = vmatprep.subr.mxu0 0.0
    %371 = vmatpush1.msra.mxu0 0.0
    %372 = vmatprep.subr.mxu0 0.0
    %373 = vmatpush1.msra.mxu0 0.0
    %374 = vmatprep.subr.mxu0 0.0
    %375 = vmatpush1.msra.mxu0 0.0
    %376 = vmatprep.subr.mxu0 0.0
    %377 = vmatpush1.msra.mxu0 0.0
    %378 = vmatprep.subr.mxu0 0.0
    %379 = vmatpush1.msra.mxu0 0.0
    %380 = vmatprep.subr.mxu0 0.0
    %381 = vmatpush1.msra.mxu0 0.0
    %382 = vmatprep.subr.mxu0 0.0
    %383 = vmatpush1.msra.mxu0 0.0
    %384 = vmatprep.subr.mxu0 0.0
    %385 = vmatpush1.msra.mxu0 0.0
    %386 = vmatprep.subr.mxu0 0.0
    %387 = vmatpush1.msra.mxu0 0.0
    %388 = vmatprep.subr.mxu0 0.0
    %389 = vmatpush1.msra.mxu0 0.0
    %390 = vmatprep.mubr.f32.mxu0 0.0
    %391 = vmatmul.mubr.f32.gmra.mrb[0].mxu0 %v304
    %v392 = vpop.f32.mrb[0].mxu0
    %v393 = vadd.f32 %v325, %v392
    %v394 = vpop.f32.mrb[0].mxu0
    %395 = vdwg.mxu0
    %v396 = vmax.f32 %v393, 0.0
    %v397 = vld [vmem:[#allocation7 + $0xb8] sm:$0x1]
    %v398 = vlaneseq
    %v399 = vshrl.u32 %v398, 7
    %v400 = vsub.s32 0, %v399
    %v401 = vrot.slane %v397, %v400
    %v402 = vmul.f32 %v396, %v401
    %403 = vadd.xlane.f32.xlu0 %v402
    %v404 = vpop.xlane.xlu0 %403
    %v405 = vld [vmem:[#allocation7 + $0xd0] sm:$0x1]
    %v406 = vlaneseq
    %v407 = vshrl.u32 %v406, 7
    %v408 = vsub.s32 0, %v407
    %v409 = vrot.slane %v405, %v408
    %v410 = vadd.f32 %v404, %v409
    %vm411 = vcmask 7168
    %412 = vst.msk [vmem:[%s4] sm:$0xff] %vm411, %v410
    // Predicated region
    $region34: #{tpu_custom_call.1} parent=1 // pred_check
      _
    $region35: #{tpu_custom_call.1} parent=1 // pred_check_branch
      %414 = sbr.rel (0) target = $region37
    $region36: #{tpu_custom_call.1} parent=1 // pred_region
      _
    $region37: #{tpu_custom_call.1} parent=1 // pred_fallthru
      _
    // Predicated region
    $region38: #{tpu_custom_call.1} parent=1 // pred_check
      _
    $region39: #{tpu_custom_call.1} parent=1 // pred_check_branch
      %416 = sbr.rel (0) target = $region41
    $region40: #{tpu_custom_call.1} parent=1 // pred_region
      _
    $region41: #{tpu_custom_call.1} parent=1 // pred_fallthru
      _
    %417 = vsyncpa [#allocation3], 1
    %418 = vsyncpa [#allocation5], 1
    %419 = vsyncpa [#allocation8], 1

</llo_original>
